<compile_context>
chip_gen: v7x
topology: tpu7x:2x2x1
jax: 0.10.0
libtpu: 0.0.40
codegen_flags: <defaults>
</compile_context>

<pallas_src>
import math
import jax
import jax.numpy as jnp
from jax.experimental import pallas as pl
from jax.experimental.pallas import tpu as pltpu


# ---------------------------------------------------------------------------
# Fused TCN kernel (all layers, per-tap accumulated matmuls, residual + ReLU)
# ---------------------------------------------------------------------------
def make_tcn_kernel(kernel_size, dilations, L, C, tile_bl, mm_dtype):
    K = kernel_size
    # Distinct nonzero causal shifts actually needed; taps with s >= L are all-zero and dropped.
    shifts = sorted({(K - 1 - j) * d for d in dilations for j in range(K)
                     if 0 < (K - 1 - j) * d < L})

    def kernel(x_ref, w1_ref, b1_ref, w2_ref, b2_ref, o_ref):
        # x_ref : (C, TILE_BL) f32      activations (whole batch segments per tile)
        # w*_ref: (NL, K, C, C) mm_dtype per-layer, per-tap conv weight matrices
        # b*_ref: (NL, C, 1)   f32      per-layer conv bias
        # o_ref : (C, TILE_BL) f32
        #
        # Tiles are batch-segment aligned, so tile-local time index mod L equals the global one.
        t = jax.lax.broadcasted_iota(jnp.int32, (1, tile_bl), 1) % L
        keep = {s: t >= s for s in shifts}      # (1, TILE_BL) bool, shared by conv1/conv2

        w1 = w1_ref[...]
        w2 = w2_ref[...]
        b1 = b1_ref[...]
        b2 = b2_ref[...]

        def shifted(x, s):
            # y[:, t] = x[:, t - s] within a batch segment, 0 for t < s (causal left padding).
            if s == 0:
                return x
            r = pltpu.roll(x, shift=s, axis=1)
            return jnp.where(keep[s], r, 0.0)   # mask kills wrap-around across segments/tiles

        def causal_conv_relu(x, w_l, b_l, d):
            # Accumulate per-tap matmuls in f32; no (K*C, TILE_BL) concat buffer.
            acc = None
            for j in range(K):                  # static unroll over taps
                s = (K - 1 - j) * d
                if s >= L:
                    continue                    # receptive field precedes the segment: zero tap
                xs = shifted(x, s).astype(mm_dtype)
                y = jnp.dot(w_l[j], xs, preferred_element_type=jnp.float32)
                acc = y if acc is None else acc + y
            if acc is None:
                acc = jnp.zeros((C, tile_bl), jnp.float32)
            return jnp.maximum(acc + b_l, 0.0)  # dropout = identity in eval mode

        act = x_ref[...]
        for l, d in enumerate(dilations):       # static unroll over layers
            h1 = causal_conv_relu(act, w1[l], b1[l], d)
            h2 = causal_conv_relu(h1, w2[l], b2[l], d)
            act = jnp.maximum(h2 + act, 0.0)    # residual (downsample is None)
        o_ref[...] = act

    return kernel


# ---------------------------------------------------------------------------
# Tiling / VMEM helpers
# ---------------------------------------------------------------------------
def _batches_per_tile(B, L, target_lanes=2048):
    """Tiles must cover whole batch segments and have a 128-multiple lane width."""
    divisors = [nb for nb in range(1, B + 1) if B % nb == 0 and (nb * L) % 128 == 0]
    if not divisors:
        return B                                   # fall back to one monolithic tile
    fitting = [nb for nb in divisors if nb * L <= target_lanes] or [min(divisors)]
    nb = max(fitting)
    if nb == B and len(divisors) > 1:
        nb = max(d for d in divisors if d < B)     # keep >=2 tiles (v7x megacore / pipelining)
    return nb


def _vmem_limit_bytes(C, tile_bl, NL, K, mm_itemsize):
    blk = C * tile_bl * 4                                        # one f32 (C, TILE_BL) block
    streams = 2 * 2 * blk                                        # in + out, double-buffered
    live = 6 * blk                                               # act, h1/h2, acc, tap temps, slack
    weights = 2 * 2 * (NL * K * C * C * mm_itemsize + NL * C * 4)  # w1/w2 + bias, double-buffered
    est = streams + live + weights + (2 << 20)                   # compiler-internal headroom
    return int(min(max(est, 8 << 20), 48 << 20))                 # stay under v7x's 64 MiB / TC


# ---------------------------------------------------------------------------
# Wrapper
# ---------------------------------------------------------------------------
def tcn_forward(x, params, kernel_size, dilations, mm_dtype=jnp.bfloat16):
    """x: (B, C, L) float32, NCL like PyTorch Conv1d. Returns (B, C, L) float32."""
    B, C, L = x.shape
    K = kernel_size
    NL = len(params)
    BL = B * L

    nb = _batches_per_tile(B, L)
    tile_bl = nb * L
    grid = (BL // tile_bl,)

    # Activation layout: (C, B*L) — channels on sublanes, flattened (batch, time) on lanes.
    x2d = jnp.transpose(x, (1, 0, 2)).reshape(C, BL)

    # (NL, K, C_out, C_in) per-layer, per-tap weight matrices in matmul dtype.
    # TODO(synk): for trained checkpoints apply weight_norm g * v / ||v|| here; at init g == ||v||
    # so raw weights are exact.
    w1_all = jnp.stack([jnp.moveaxis(w1, 2, 0) for (w1, _, _, _) in params]).astype(mm_dtype)
    w2_all = jnp.stack([jnp.moveaxis(w2, 2, 0) for (_, _, w2, _) in params]).astype(mm_dtype)
    b1_all = jnp.stack([b1.reshape(C, 1) for (_, b1, _, _) in params]).astype(jnp.float32)
    b2_all = jnp.stack([b2.reshape(C, 1) for (_, _, _, b2) in params]).astype(jnp.float32)

    kernel = make_tcn_kernel(K, tuple(dilations), L, C, tile_bl, mm_dtype)
    const4 = lambda i: (0, 0, 0, 0)
    const3 = lambda i: (0, 0, 0)

    out2d = pl.pallas_call(
        kernel,
        out_shape=jax.ShapeDtypeStruct((C, BL), jnp.float32),
        grid=grid,
        in_specs=[
            pl.BlockSpec((C, tile_bl), lambda i: (0, i)),   # streamed activation tiles
            pl.BlockSpec((NL, K, C, C), const4),            # weights: constant map -> resident
            pl.BlockSpec((NL, C, 1), const3),
            pl.BlockSpec((NL, K, C, C), const4),
            pl.BlockSpec((NL, C, 1), const3),
        ],
        out_specs=pl.BlockSpec((C, tile_bl), lambda i: (0, i)),
        compiler_params=pltpu.CompilerParams(
            dimension_semantics=("parallel",),              # independent tiles -> v7x megacore
            vmem_limit_bytes=_vmem_limit_bytes(C, tile_bl, NL, K,
                                               jnp.dtype(mm_dtype).itemsize),
        ),
    )(x2d, w1_all, b1_all, w2_all, b2_all)

    return jnp.transpose(out2d.reshape(C, B, L), (1, 0, 2))


# ---------------------------------------------------------------------------
# Pure-JAX reference (correctness check only)
# ---------------------------------------------------------------------------
def ref_tcn(x, params, kernel_size, dilations):
    out = x
    for (w1, b1, w2, b2), d in zip(params, dilations):
        pad = (kernel_size - 1) * d

        def causal_conv(inp, w, b):
            y = jax.lax.conv_general_dilated(
                inp, w, window_strides=(1,), padding=[(pad, 0)],
                rhs_dilation=(d,), dimension_numbers=("NCH", "OIH", "NCH"),
                precision=jax.lax.Precision.HIGHEST)
            return y + b[None, :, None]

        h1 = jax.nn.relu(causal_conv(out, w1, b1))
        h2 = jax.nn.relu(causal_conv(h1, w2, b2))
        out = jax.nn.relu(h2 + out)
    return out


# ---------------------------------------------------------------------------
if __name__ == "__main__":
    B, L = 2, 128
    num_inputs = 8
    num_channels = [8, 8, 8]     # must all equal num_inputs (conv2 in_channels in the PyTorch spec)
    kernel_size = 2

    key = jax.random.PRNGKey(0)
    kx, kp = jax.random.split(key)
    x = jax.random.normal(kx, (B, num_inputs, L), jnp.float32)

    params = []
    dilations = []
    keys = jax.random.split(kp, 4 * len(num_channels))
    for i, c_out in enumerate(num_channels):
        c_in = num_inputs if i == 0 else num_channels[i - 1]
        assert c_in == c_out, "PyTorch module requires equal channel counts (conv2 in_channels)"
        k1, k2, k3, k4 = keys[4 * i: 4 * i + 4]
        bound = 1.0 / math.sqrt(c_in * kernel_size)
        # weight_norm at init is identity; conv weights ~ N(0, 0.01) per init_weights()
        w1 = 0.01 * jax.random.normal(k1, (c_out, c_in, kernel_size), jnp.float32)
        b1 = jax.random.uniform(k2, (c_out,), jnp.float32, -bound, bound)
        w2 = 0.01 * jax.random.normal(k3, (c_out, c_in, kernel_size), jnp.float32)
        b2 = jax.random.uniform(k4, (c_out,), jnp.float32, -bound, bound)
        params.append((w1, b1, w2, b2))
        dilations.append(2 ** i)

    ref = ref_tcn(x, params, kernel_size, dilations)

    # bf16-at-the-MXU path (default; fast on v6e/v7x) — bf16-class accuracy vs HIGHEST-prec ref.
    out_bf16 = jax.block_until_ready(
        tcn_forward(x, params, kernel_size, dilations, mm_dtype=jnp.bfloat16))
    assert out_bf16.shape == (B, num_channels[-1], L)
    assert jnp.allclose(out_bf16, ref, atol=1e-2, rtol=1e-2), "bf16 path mismatch vs reference"

    # f32-operand path (tighter accuracy; default MXU precision, no multi-pass).
    out_f32 = jax.block_until_ready(
        tcn_forward(x, params, kernel_size, dilations, mm_dtype=jnp.float32))
    assert jnp.allclose(out_f32, ref, atol=2e-3, rtol=2e-3), "f32 path mismatch vs reference"

    # TODO(synk): nn.Dropout is modeled as eval-mode identity (training RNG masks not reproduced).
    print("KERNEL_OK")
</pallas_src>

<mosaic_0001>
module attributes {stable_mosaic.version = 11 : i64} {
  func.func @kernel(%arg0: i32, %arg1: memref<8x128xf32, #tpu.memory_space<vmem>>, %arg2: memref<3x2x8x8xbf16, #tpu.memory_space<vmem>>, %arg3: memref<3x8x1xf32, #tpu.memory_space<vmem>>, %arg4: memref<3x2x8x8xbf16, #tpu.memory_space<vmem>>, %arg5: memref<3x8x1xf32, #tpu.memory_space<vmem>>, %arg6: memref<8x128xf32, #tpu.memory_space<vmem>>) attributes {dimension_semantics = [#tpu.dimension_semantics<parallel>], iteration_bounds = array<i64: 2>, scalar_prefetch = 0 : i64, scratch_operands = 0 : i64, tpu.core_type = #tpu.core_type<tc>, window_params = [{transform_indices = @transform_0, window_bounds = array<i64: 8, 128>}, {pipeline_mode = #tpu.pipeline_mode<synchronous>, transform_indices = @transform_1, window_bounds = array<i64: 3, 2, 8, 8>}, {pipeline_mode = #tpu.pipeline_mode<synchronous>, transform_indices = @transform_2, window_bounds = array<i64: 3, 8, 1>}, {pipeline_mode = #tpu.pipeline_mode<synchronous>, transform_indices = @transform_3, window_bounds = array<i64: 3, 2, 8, 8>}, {pipeline_mode = #tpu.pipeline_mode<synchronous>, transform_indices = @transform_4, window_bounds = array<i64: 3, 8, 1>}, {transform_indices = @transform_5, window_bounds = array<i64: 8, 128>}]} {
    %0 = tpu.iota {dimensions = array<i32: 1>} : vector<1x128xi32>
    %c128_i32 = arith.constant 128 : i32
    %c0_i32 = arith.constant 0 : i32
    %1 = arith.cmpi eq, %c128_i32, %c0_i32 : i32
    %c1_i32 = arith.constant 1 : i32
    %2 = arith.select %1, %c1_i32, %c128_i32 : i32
    %3 = vector.broadcast %2 : i32 to vector<1x128xi32>
    %4 = arith.remsi %0, %3 : vector<1x128xi32>
    %c0_i32_0 = arith.constant 0 : i32
    %5 = vector.broadcast %c0_i32_0 : i32 to vector<1x128xi32>
    %6 = arith.cmpi ne, %4, %5 : vector<1x128xi32>
    %c0_i32_1 = arith.constant 0 : i32
    %7 = vector.broadcast %c0_i32_1 : i32 to vector<1x128xi32>
    %8 = arith.cmpi slt, %4, %7 : vector<1x128xi32>
    %c0_i32_2 = arith.constant 0 : i32
    %9 = arith.cmpi slt, %2, %c0_i32_2 : i32
    %10 = vector.broadcast %9 : i1 to vector<1x128xi1>
    %11 = vector.broadcast %10 : vector<1x128xi1> to vector<1x128xi1>
    %12 = arith.xori %8, %11 : vector<1x128xi1>
    %13 = arith.andi %12, %6 : vector<1x128xi1>
    %14 = vector.broadcast %2 : i32 to vector<1x128xi32>
    %15 = arith.addi %4, %14 : vector<1x128xi32>
    %16 = arith.select %13, %15, %4 : vector<1x128xi1>, vector<1x128xi32>
    %c1_i32_3 = arith.constant 1 : i32
    %17 = vector.broadcast %c1_i32_3 : i32 to vector<1x128xi32>
    %18 = arith.cmpi sge, %16, %17 : vector<1x128xi32>
    %c2_i32 = arith.constant 2 : i32
    %19 = vector.broadcast %c2_i32 : i32 to vector<1x128xi32>
    %20 = arith.cmpi sge, %16, %19 : vector<1x128xi32>
    %c4_i32 = arith.constant 4 : i32
    %21 = vector.broadcast %c4_i32 : i32 to vector<1x128xi32>
    %22 = arith.cmpi sge, %16, %21 : vector<1x128xi32>
    %c0 = arith.constant 0 : index
    %c0_4 = arith.constant 0 : index
    %c0_5 = arith.constant 0 : index
    %c0_6 = arith.constant 0 : index
    %23 = vector.load %arg2[%c0, %c0_4, %c0_5, %c0_6] : memref<3x2x8x8xbf16, #tpu.memory_space<vmem>>, vector<3x2x8x8xbf16>
    %c0_7 = arith.constant 0 : index
    %c0_8 = arith.constant 0 : index
    %c0_9 = arith.constant 0 : index
    %c0_10 = arith.constant 0 : index
    %24 = vector.load %arg4[%c0_7, %c0_8, %c0_9, %c0_10] : memref<3x2x8x8xbf16, #tpu.memory_space<vmem>>, vector<3x2x8x8xbf16>
    %c0_11 = arith.constant 0 : index
    %c0_12 = arith.constant 0 : index
    %c0_13 = arith.constant 0 : index
    %25 = vector.load %arg3[%c0_11, %c0_12, %c0_13] : memref<3x8x1xf32, #tpu.memory_space<vmem>>, vector<3x8x1xf32>
    %c0_14 = arith.constant 0 : index
    %c0_15 = arith.constant 0 : index
    %c0_16 = arith.constant 0 : index
    %26 = vector.load %arg5[%c0_14, %c0_15, %c0_16] : memref<3x8x1xf32, #tpu.memory_space<vmem>>, vector<3x8x1xf32>
    %c0_17 = arith.constant 0 : index
    %c0_18 = arith.constant 0 : index
    %27 = vector.load %arg1[%c0_17, %c0_18] : memref<8x128xf32, #tpu.memory_space<vmem>>, vector<8x128xf32>
    %28 = vector.extract_strided_slice %23 {offsets = [0, 0, 0, 0], sizes = [1, 2, 8, 8], strides = [1, 1, 1, 1]} : vector<3x2x8x8xbf16> to vector<1x2x8x8xbf16>
    %29 = vector.shape_cast %28 : vector<1x2x8x8xbf16> to vector<2x8x8xbf16>
    %30 = vector.extract_strided_slice %25 {offsets = [0, 0, 0], sizes = [1, 8, 1], strides = [1, 1, 1]} : vector<3x8x1xf32> to vector<1x8x1xf32>
    %31 = vector.shape_cast %30 : vector<1x8x1xf32> to vector<8x1xf32>
    %c1_i32_19 = arith.constant 1 : i32
    %32 = tpu.dynamic_rotate %27 by %c1_i32_19 dim 1 : vector<8x128xf32>, i32 -> vector<8x128xf32>
    %cst = arith.constant 0.000000e+00 : f32
    %33 = vector.shape_cast %18 : vector<1x128xi1> to vector<1x128xi1>
    %34 = vector.broadcast %33 : vector<1x128xi1> to vector<8x128xi1>
    %35 = vector.broadcast %cst : f32 to vector<8x128xf32>
    %36 = arith.select %34, %32, %35 : vector<8x128xi1>, vector<8x128xf32>
    %37 = arith.truncf %36 : vector<8x128xf32> to vector<8x128xbf16>
    %38 = vector.extract_strided_slice %29 {offsets = [0, 0, 0], sizes = [1, 8, 8], strides = [1, 1, 1]} : vector<2x8x8xbf16> to vector<1x8x8xbf16>
    %39 = vector.shape_cast %38 : vector<1x8x8xbf16> to vector<8x8xbf16>
    %cst_20 = arith.constant dense<0.000000e+00> : vector<8x128xf32>
    %40 = tpu.matmul %39, %37, %cst_20 {dimension_numbers = #tpu.dot_dimension_numbers<[1], [0], [0], [1], [0, 0, 1, 1], [], []>} : vector<8x8xbf16>, vector<8x128xbf16>, vector<8x128xf32> -> vector<8x128xf32>
    %41 = arith.truncf %27 : vector<8x128xf32> to vector<8x128xbf16>
    %42 = vector.extract_strided_slice %29 {offsets = [1, 0, 0], sizes = [1, 8, 8], strides = [1, 1, 1]} : vector<2x8x8xbf16> to vector<1x8x8xbf16>
    %43 = vector.shape_cast %42 : vector<1x8x8xbf16> to vector<8x8xbf16>
    %cst_21 = arith.constant dense<0.000000e+00> : vector<8x128xf32>
    %44 = tpu.matmul %43, %41, %cst_21 {dimension_numbers = #tpu.dot_dimension_numbers<[1], [0], [0], [1], [0, 0, 1, 1], [], []>} : vector<8x8xbf16>, vector<8x128xbf16>, vector<8x128xf32> -> vector<8x128xf32>
    %45 = arith.addf %40, %44 : vector<8x128xf32>
    %46 = vector.broadcast %31 : vector<8x1xf32> to vector<8x128xf32>
    %47 = arith.addf %45, %46 : vector<8x128xf32>
    %cst_22 = arith.constant 0.000000e+00 : f32
    %48 = vector.broadcast %cst_22 : f32 to vector<8x128xf32>
    %49 = arith.maximumf %47, %48 : vector<8x128xf32>
    %50 = vector.extract_strided_slice %24 {offsets = [0, 0, 0, 0], sizes = [1, 2, 8, 8], strides = [1, 1, 1, 1]} : vector<3x2x8x8xbf16> to vector<1x2x8x8xbf16>
    %51 = vector.shape_cast %50 : vector<1x2x8x8xbf16> to vector<2x8x8xbf16>
    %52 = vector.extract_strided_slice %26 {offsets = [0, 0, 0], sizes = [1, 8, 1], strides = [1, 1, 1]} : vector<3x8x1xf32> to vector<1x8x1xf32>
    %53 = vector.shape_cast %52 : vector<1x8x1xf32> to vector<8x1xf32>
    %c1_i32_23 = arith.constant 1 : i32
    %54 = tpu.dynamic_rotate %49 by %c1_i32_23 dim 1 : vector<8x128xf32>, i32 -> vector<8x128xf32>
    %cst_24 = arith.constant 0.000000e+00 : f32
    %55 = vector.shape_cast %18 : vector<1x128xi1> to vector<1x128xi1>
    %56 = vector.broadcast %55 : vector<1x128xi1> to vector<8x128xi1>
    %57 = vector.broadcast %cst_24 : f32 to vector<8x128xf32>
    %58 = arith.select %56, %54, %57 : vector<8x128xi1>, vector<8x128xf32>
    %59 = arith.truncf %58 : vector<8x128xf32> to vector<8x128xbf16>
    %60 = vector.extract_strided_slice %51 {offsets = [0, 0, 0], sizes = [1, 8, 8], strides = [1, 1, 1]} : vector<2x8x8xbf16> to vector<1x8x8xbf16>
    %61 = vector.shape_cast %60 : vector<1x8x8xbf16> to vector<8x8xbf16>
    %cst_25 = arith.constant dense<0.000000e+00> : vector<8x128xf32>
    %62 = tpu.matmul %61, %59, %cst_25 {dimension_numbers = #tpu.dot_dimension_numbers<[1], [0], [0], [1], [0, 0, 1, 1], [], []>} : vector<8x8xbf16>, vector<8x128xbf16>, vector<8x128xf32> -> vector<8x128xf32>
    %63 = arith.truncf %49 : vector<8x128xf32> to vector<8x128xbf16>
    %64 = vector.extract_strided_slice %51 {offsets = [1, 0, 0], sizes = [1, 8, 8], strides = [1, 1, 1]} : vector<2x8x8xbf16> to vector<1x8x8xbf16>
    %65 = vector.shape_cast %64 : vector<1x8x8xbf16> to vector<8x8xbf16>
    %cst_26 = arith.constant dense<0.000000e+00> : vector<8x128xf32>
    %66 = tpu.matmul %65, %63, %cst_26 {dimension_numbers = #tpu.dot_dimension_numbers<[1], [0], [0], [1], [0, 0, 1, 1], [], []>} : vector<8x8xbf16>, vector<8x128xbf16>, vector<8x128xf32> -> vector<8x128xf32>
    %67 = arith.addf %62, %66 : vector<8x128xf32>
    %68 = vector.broadcast %53 : vector<8x1xf32> to vector<8x128xf32>
    %69 = arith.addf %67, %68 : vector<8x128xf32>
    %cst_27 = arith.constant 0.000000e+00 : f32
    %70 = vector.broadcast %cst_27 : f32 to vector<8x128xf32>
    %71 = arith.maximumf %69, %70 : vector<8x128xf32>
    %72 = arith.addf %71, %27 : vector<8x128xf32>
    %cst_28 = arith.constant 0.000000e+00 : f32
    %73 = vector.broadcast %cst_28 : f32 to vector<8x128xf32>
    %74 = arith.maximumf %72, %73 : vector<8x128xf32>
    %75 = vector.extract_strided_slice %23 {offsets = [1, 0, 0, 0], sizes = [1, 2, 8, 8], strides = [1, 1, 1, 1]} : vector<3x2x8x8xbf16> to vector<1x2x8x8xbf16>
    %76 = vector.shape_cast %75 : vector<1x2x8x8xbf16> to vector<2x8x8xbf16>
    %77 = vector.extract_strided_slice %25 {offsets = [1, 0, 0], sizes = [1, 8, 1], strides = [1, 1, 1]} : vector<3x8x1xf32> to vector<1x8x1xf32>
    %78 = vector.shape_cast %77 : vector<1x8x1xf32> to vector<8x1xf32>
    %c2_i32_29 = arith.constant 2 : i32
    %79 = tpu.dynamic_rotate %74 by %c2_i32_29 dim 1 : vector<8x128xf32>, i32 -> vector<8x128xf32>
    %cst_30 = arith.constant 0.000000e+00 : f32
    %80 = vector.shape_cast %20 : vector<1x128xi1> to vector<1x128xi1>
    %81 = vector.broadcast %80 : vector<1x128xi1> to vector<8x128xi1>
    %82 = vector.broadcast %cst_30 : f32 to vector<8x128xf32>
    %83 = arith.select %81, %79, %82 : vector<8x128xi1>, vector<8x128xf32>
    %84 = arith.truncf %83 : vector<8x128xf32> to vector<8x128xbf16>
    %85 = vector.extract_strided_slice %76 {offsets = [0, 0, 0], sizes = [1, 8, 8], strides = [1, 1, 1]} : vector<2x8x8xbf16> to vector<1x8x8xbf16>
    %86 = vector.shape_cast %85 : vector<1x8x8xbf16> to vector<8x8xbf16>
    %cst_31 = arith.constant dense<0.000000e+00> : vector<8x128xf32>
    %87 = tpu.matmul %86, %84, %cst_31 {dimension_numbers = #tpu.dot_dimension_numbers<[1], [0], [0], [1], [0, 0, 1, 1], [], []>} : vector<8x8xbf16>, vector<8x128xbf16>, vector<8x128xf32> -> vector<8x128xf32>
    %88 = arith.truncf %74 : vector<8x128xf32> to vector<8x128xbf16>
    %89 = vector.extract_strided_slice %76 {offsets = [1, 0, 0], sizes = [1, 8, 8], strides = [1, 1, 1]} : vector<2x8x8xbf16> to vector<1x8x8xbf16>
    %90 = vector.shape_cast %89 : vector<1x8x8xbf16> to vector<8x8xbf16>
    %cst_32 = arith.constant dense<0.000000e+00> : vector<8x128xf32>
    %91 = tpu.matmul %90, %88, %cst_32 {dimension_numbers = #tpu.dot_dimension_numbers<[1], [0], [0], [1], [0, 0, 1, 1], [], []>} : vector<8x8xbf16>, vector<8x128xbf16>, vector<8x128xf32> -> vector<8x128xf32>
    %92 = arith.addf %87, %91 : vector<8x128xf32>
    %93 = vector.broadcast %78 : vector<8x1xf32> to vector<8x128xf32>
    %94 = arith.addf %92, %93 : vector<8x128xf32>
    %cst_33 = arith.constant 0.000000e+00 : f32
    %95 = vector.broadcast %cst_33 : f32 to vector<8x128xf32>
    %96 = arith.maximumf %94, %95 : vector<8x128xf32>
    %97 = vector.extract_strided_slice %24 {offsets = [1, 0, 0, 0], sizes = [1, 2, 8, 8], strides = [1, 1, 1, 1]} : vector<3x2x8x8xbf16> to vector<1x2x8x8xbf16>
    %98 = vector.shape_cast %97 : vector<1x2x8x8xbf16> to vector<2x8x8xbf16>
    %99 = vector.extract_strided_slice %26 {offsets = [1, 0, 0], sizes = [1, 8, 1], strides = [1, 1, 1]} : vector<3x8x1xf32> to vector<1x8x1xf32>
    %100 = vector.shape_cast %99 : vector<1x8x1xf32> to vector<8x1xf32>
    %c2_i32_34 = arith.constant 2 : i32
    %101 = tpu.dynamic_rotate %96 by %c2_i32_34 dim 1 : vector<8x128xf32>, i32 -> vector<8x128xf32>
    %cst_35 = arith.constant 0.000000e+00 : f32
    %102 = vector.shape_cast %20 : vector<1x128xi1> to vector<1x128xi1>
    %103 = vector.broadcast %102 : vector<1x128xi1> to vector<8x128xi1>
    %104 = vector.broadcast %cst_35 : f32 to vector<8x128xf32>
    %105 = arith.select %103, %101, %104 : vector<8x128xi1>, vector<8x128xf32>
    %106 = arith.truncf %105 : vector<8x128xf32> to vector<8x128xbf16>
    %107 = vector.extract_strided_slice %98 {offsets = [0, 0, 0], sizes = [1, 8, 8], strides = [1, 1, 1]} : vector<2x8x8xbf16> to vector<1x8x8xbf16>
    %108 = vector.shape_cast %107 : vector<1x8x8xbf16> to vector<8x8xbf16>
    %cst_36 = arith.constant dense<0.000000e+00> : vector<8x128xf32>
    %109 = tpu.matmul %108, %106, %cst_36 {dimension_numbers = #tpu.dot_dimension_numbers<[1], [0], [0], [1], [0, 0, 1, 1], [], []>} : vector<8x8xbf16>, vector<8x128xbf16>, vector<8x128xf32> -> vector<8x128xf32>
    %110 = arith.truncf %96 : vector<8x128xf32> to vector<8x128xbf16>
    %111 = vector.extract_strided_slice %98 {offsets = [1, 0, 0], sizes = [1, 8, 8], strides = [1, 1, 1]} : vector<2x8x8xbf16> to vector<1x8x8xbf16>
    %112 = vector.shape_cast %111 : vector<1x8x8xbf16> to vector<8x8xbf16>
    %cst_37 = arith.constant dense<0.000000e+00> : vector<8x128xf32>
    %113 = tpu.matmul %112, %110, %cst_37 {dimension_numbers = #tpu.dot_dimension_numbers<[1], [0], [0], [1], [0, 0, 1, 1], [], []>} : vector<8x8xbf16>, vector<8x128xbf16>, vector<8x128xf32> -> vector<8x128xf32>
    %114 = arith.addf %109, %113 : vector<8x128xf32>
    %115 = vector.broadcast %100 : vector<8x1xf32> to vector<8x128xf32>
    %116 = arith.addf %114, %115 : vector<8x128xf32>
    %cst_38 = arith.constant 0.000000e+00 : f32
    %117 = vector.broadcast %cst_38 : f32 to vector<8x128xf32>
    %118 = arith.maximumf %116, %117 : vector<8x128xf32>
    %119 = arith.addf %118, %74 : vector<8x128xf32>
    %cst_39 = arith.constant 0.000000e+00 : f32
    %120 = vector.broadcast %cst_39 : f32 to vector<8x128xf32>
    %121 = arith.maximumf %119, %120 : vector<8x128xf32>
    %122 = vector.extract_strided_slice %23 {offsets = [2, 0, 0, 0], sizes = [1, 2, 8, 8], strides = [1, 1, 1, 1]} : vector<3x2x8x8xbf16> to vector<1x2x8x8xbf16>
    %123 = vector.shape_cast %122 : vector<1x2x8x8xbf16> to vector<2x8x8xbf16>
    %124 = vector.extract_strided_slice %25 {offsets = [2, 0, 0], sizes = [1, 8, 1], strides = [1, 1, 1]} : vector<3x8x1xf32> to vector<1x8x1xf32>
    %125 = vector.shape_cast %124 : vector<1x8x1xf32> to vector<8x1xf32>
    %c4_i32_40 = arith.constant 4 : i32
    %126 = tpu.dynamic_rotate %121 by %c4_i32_40 dim 1 : vector<8x128xf32>, i32 -> vector<8x128xf32>
    %cst_41 = arith.constant 0.000000e+00 : f32
    %127 = vector.shape_cast %22 : vector<1x128xi1> to vector<1x128xi1>
    %128 = vector.broadcast %127 : vector<1x128xi1> to vector<8x128xi1>
    %129 = vector.broadcast %cst_41 : f32 to vector<8x128xf32>
    %130 = arith.select %128, %126, %129 : vector<8x128xi1>, vector<8x128xf32>
    %131 = arith.truncf %130 : vector<8x128xf32> to vector<8x128xbf16>
    %132 = vector.extract_strided_slice %123 {offsets = [0, 0, 0], sizes = [1, 8, 8], strides = [1, 1, 1]} : vector<2x8x8xbf16> to vector<1x8x8xbf16>
    %133 = vector.shape_cast %132 : vector<1x8x8xbf16> to vector<8x8xbf16>
    %cst_42 = arith.constant dense<0.000000e+00> : vector<8x128xf32>
    %134 = tpu.matmul %133, %131, %cst_42 {dimension_numbers = #tpu.dot_dimension_numbers<[1], [0], [0], [1], [0, 0, 1, 1], [], []>} : vector<8x8xbf16>, vector<8x128xbf16>, vector<8x128xf32> -> vector<8x128xf32>
    %135 = arith.truncf %121 : vector<8x128xf32> to vector<8x128xbf16>
    %136 = vector.extract_strided_slice %123 {offsets = [1, 0, 0], sizes = [1, 8, 8], strides = [1, 1, 1]} : vector<2x8x8xbf16> to vector<1x8x8xbf16>
    %137 = vector.shape_cast %136 : vector<1x8x8xbf16> to vector<8x8xbf16>
    %cst_43 = arith.constant dense<0.000000e+00> : vector<8x128xf32>
    %138 = tpu.matmul %137, %135, %cst_43 {dimension_numbers = #tpu.dot_dimension_numbers<[1], [0], [0], [1], [0, 0, 1, 1], [], []>} : vector<8x8xbf16>, vector<8x128xbf16>, vector<8x128xf32> -> vector<8x128xf32>
    %139 = arith.addf %134, %138 : vector<8x128xf32>
    %140 = vector.broadcast %125 : vector<8x1xf32> to vector<8x128xf32>
    %141 = arith.addf %139, %140 : vector<8x128xf32>
    %cst_44 = arith.constant 0.000000e+00 : f32
    %142 = vector.broadcast %cst_44 : f32 to vector<8x128xf32>
    %143 = arith.maximumf %141, %142 : vector<8x128xf32>
    %144 = vector.extract_strided_slice %24 {offsets = [2, 0, 0, 0], sizes = [1, 2, 8, 8], strides = [1, 1, 1, 1]} : vector<3x2x8x8xbf16> to vector<1x2x8x8xbf16>
    %145 = vector.shape_cast %144 : vector<1x2x8x8xbf16> to vector<2x8x8xbf16>
    %146 = vector.extract_strided_slice %26 {offsets = [2, 0, 0], sizes = [1, 8, 1], strides = [1, 1, 1]} : vector<3x8x1xf32> to vector<1x8x1xf32>
    %147 = vector.shape_cast %146 : vector<1x8x1xf32> to vector<8x1xf32>
    %c4_i32_45 = arith.constant 4 : i32
    %148 = tpu.dynamic_rotate %143 by %c4_i32_45 dim 1 : vector<8x128xf32>, i32 -> vector<8x128xf32>
    %cst_46 = arith.constant 0.000000e+00 : f32
    %149 = vector.shape_cast %22 : vector<1x128xi1> to vector<1x128xi1>
    %150 = vector.broadcast %149 : vector<1x128xi1> to vector<8x128xi1>
    %151 = vector.broadcast %cst_46 : f32 to vector<8x128xf32>
    %152 = arith.select %150, %148, %151 : vector<8x128xi1>, vector<8x128xf32>
    %153 = arith.truncf %152 : vector<8x128xf32> to vector<8x128xbf16>
    %154 = vector.extract_strided_slice %145 {offsets = [0, 0, 0], sizes = [1, 8, 8], strides = [1, 1, 1]} : vector<2x8x8xbf16> to vector<1x8x8xbf16>
    %155 = vector.shape_cast %154 : vector<1x8x8xbf16> to vector<8x8xbf16>
    %cst_47 = arith.constant dense<0.000000e+00> : vector<8x128xf32>
    %156 = tpu.matmul %155, %153, %cst_47 {dimension_numbers = #tpu.dot_dimension_numbers<[1], [0], [0], [1], [0, 0, 1, 1], [], []>} : vector<8x8xbf16>, vector<8x128xbf16>, vector<8x128xf32> -> vector<8x128xf32>
    %157 = arith.truncf %143 : vector<8x128xf32> to vector<8x128xbf16>
    %158 = vector.extract_strided_slice %145 {offsets = [1, 0, 0], sizes = [1, 8, 8], strides = [1, 1, 1]} : vector<2x8x8xbf16> to vector<1x8x8xbf16>
    %159 = vector.shape_cast %158 : vector<1x8x8xbf16> to vector<8x8xbf16>
    %cst_48 = arith.constant dense<0.000000e+00> : vector<8x128xf32>
    %160 = tpu.matmul %159, %157, %cst_48 {dimension_numbers = #tpu.dot_dimension_numbers<[1], [0], [0], [1], [0, 0, 1, 1], [], []>} : vector<8x8xbf16>, vector<8x128xbf16>, vector<8x128xf32> -> vector<8x128xf32>
    %161 = arith.addf %156, %160 : vector<8x128xf32>
    %162 = vector.broadcast %147 : vector<8x1xf32> to vector<8x128xf32>
    %163 = arith.addf %161, %162 : vector<8x128xf32>
    %cst_49 = arith.constant 0.000000e+00 : f32
    %164 = vector.broadcast %cst_49 : f32 to vector<8x128xf32>
    %165 = arith.maximumf %163, %164 : vector<8x128xf32>
    %166 = arith.addf %165, %121 : vector<8x128xf32>
    %cst_50 = arith.constant 0.000000e+00 : f32
    %167 = vector.broadcast %cst_50 : f32 to vector<8x128xf32>
    %168 = arith.maximumf %166, %167 : vector<8x128xf32>
    %c0_51 = arith.constant 0 : index
    %c0_52 = arith.constant 0 : index
    %169 = vector.load %arg6[%c0_51, %c0_52] : memref<8x128xf32, #tpu.memory_space<vmem>>, vector<8x128xf32>
    tpu.vector_store %arg6[%c0_51, %c0_52], %168 {strides = array<i32>} : memref<8x128xf32, #tpu.memory_space<vmem>>, vector<8x128xf32>,
    return
  }
  func.func @transform_0(%arg0: i32) -> (i32, i32) {
    %c0_i32 = arith.constant 0 : i32
    %c0_i32_0 = arith.constant 0 : i32
    return %c0_i32, %arg0 : i32, i32
  }
  func.func @transform_1(%arg0: i32) -> (i32, i32, i32, i32) {
    %c0_i32 = arith.constant 0 : i32
    %c0_i32_0 = arith.constant 0 : i32
    %c0_i32_1 = arith.constant 0 : i32
    %c0_i32_2 = arith.constant 0 : i32
    %c0_i32_3 = arith.constant 0 : i32
    return %c0_i32, %c0_i32_0, %c0_i32_1, %c0_i32_2 : i32, i32, i32, i32
  }
  func.func @transform_2(%arg0: i32) -> (i32, i32, i32) {
    %c0_i32 = arith.constant 0 : i32
    %c0_i32_0 = arith.constant 0 : i32
    %c0_i32_1 = arith.constant 0 : i32
    %c0_i32_2 = arith.constant 0 : i32
    return %c0_i32, %c0_i32_0, %c0_i32_1 : i32, i32, i32
  }
  func.func @transform_3(%arg0: i32) -> (i32, i32, i32, i32) {
    %c0_i32 = arith.constant 0 : i32
    %c0_i32_0 = arith.constant 0 : i32
    %c0_i32_1 = arith.constant 0 : i32
    %c0_i32_2 = arith.constant 0 : i32
    %c0_i32_3 = arith.constant 0 : i32
    return %c0_i32, %c0_i32_0, %c0_i32_1, %c0_i32_2 : i32, i32, i32, i32
  }
  func.func @transform_4(%arg0: i32) -> (i32, i32, i32) {
    %c0_i32 = arith.constant 0 : i32
    %c0_i32_0 = arith.constant 0 : i32
    %c0_i32_1 = arith.constant 0 : i32
    %c0_i32_2 = arith.constant 0 : i32
    return %c0_i32, %c0_i32_0, %c0_i32_1 : i32, i32, i32
  }
  func.func @transform_5(%arg0: i32) -> (i32, i32) {
    %c0_i32 = arith.constant 0 : i32
    %c0_i32_0 = arith.constant 0 : i32
    return %c0_i32, %arg0 : i32, i32
  }
}

</mosaic_0001>

<llo_original>
// kernel: tpu_custom_call.1
$region0: #{tpu_custom_call.1}
  #allocation0 [shape = 'u32[]', space=smem, size = 0x4, offset = 0x4, fixed_abs, tag = 'smem constant byte address 0x4 - core index']
  #allocation1 [shape = 'u32[144,128]{1,0:T(1,128)}', space=vmem, size = 0x12000, scoped, tag = 'internal scratch']
  %s0 = inlined_call_operand.hbm [shape: f32[8,256], index: 0, kind: input, shape index: {}]
  %s1 = inlined_call_operand.vmem [shape: bf16[3,2,8,8], index: 1, kind: input, shape index: {}]
  %s2 = inlined_call_operand.vmem [shape: f32[3,8,1], index: 2, kind: input, shape index: {}]
  %s3 = inlined_call_operand.vmem [shape: bf16[3,2,8,8], index: 3, kind: input, shape index: {}]
  %s4 = inlined_call_operand.vmem [shape: f32[3,8,1], index: 4, kind: input, shape index: {}]
  %s5 = inlined_call_operand.hbm [shape: f32[8,256], index: 5, kind: output, shape index: {}]
  %s6 = sld [smem:[#allocation0]]
  $region57: #{tpu_custom_call.1} parent=0
    _
  %s8 = ssub.s32 1, %s6
  %s9 = scalar_select 0, %s8, %s6
  $region1: #{tpu_custom_call.1} parent=0
    #allocation2 [shape = 'u8[8192]{0}', space=vmem, size = 0x2000, scoped, tag = 'input window, operand 0']
    #allocation3 [shape = 's32[2]{0}', space=sflag, size = 0x8, scoped, tag = 'scoped memory for tpu_custom_call.1']
    #allocation4 [shape = 's32[2]{0}', space=sflag, size = 0x8, scoped, tag = 'scoped memory for tpu_custom_call.1']
    #allocation5 [shape = 'u8[8192]{0}', space=vmem, size = 0x2000, scoped, tag = 'output window, operand 0']
    %10 = vsyncpa [#allocation3], 0
    %s11 = scalar_lea.sflag [#allocation3], 1
    %12 = vsyncpa %s11, 0
    %13 = vsyncpa [#allocation4], 0
    %s14 = scalar_lea.sflag [#allocation4], 1
    %15 = vsyncpa %s14, 0
    loop: start=0, step=1, limit=4
    $region2: #{tpu_custom_call.1} parent=1 // loop_pre_header
      _
    $region3: #{tpu_custom_call.1} parent=1 // loop_header
      %s17 = sphi 0, %s21
      %p18 = scmp.ge.s32.totalorder %s17, 4
      %s27 = sphi 0, %s29
      %s30 = sphi 0, %s27
      %s31 = sphi 0, %s30
      %s47 = sphi 0, %s31
      %s51 = sphi 0, %s51
      %s53 = sphi 0, %s51
      %s54 = sphi 0, %s53
      %s68 = sphi 0, %s54
      %s72 = sphi 0, %s72
      %s74 = sphi 0, %s72
      %s75 = sphi 0, %s74
      %s89 = sphi 0, %s75
      %s93 = sphi 0, %s93
      %s95 = sphi 0, %s93
      %s96 = sphi 0, %s95
      %s110 = sphi 0, %s96
      %s114 = sphi 0, %s114
      %s116 = sphi 0, %s114
      %s117 = sphi 0, %s116
      %s131 = sphi 0, %s117
      %s137 = sphi 0, %s139
      %s140 = sphi 0, %s137
      %s141 = sphi 0, %s140
      %s157 = sphi 0, %s141
    $region4: #{tpu_custom_call.1} parent=1 // loop_header_branch
      %20 = sbr.rel (%p18) target = $region8
    $region5: #{tpu_custom_call.1} parent=1 // loop_body
      %s22 = ssub.s32 %s17, 1
      %s23 = ssub.s32 %s17, 2
      %s24 = sadd.s32 %s17, 1
      %s25 = ssub.s32 %s17, %s24
      %p26 = scmp.eq.s32.totalorder %s25, 0
      %s28 = sadd.s32 %s27, 1
      %s29 = scalar_select %p26, %s27, %s28
      %p32 = pneg %p26
      %p33 = scmp.eq.s32.totalorder %s17, 1
      %p34 = por %p32, %p33
      %p35 = scmp.ne.s32.totalorder %s27, %s30
      %p36 = scmp.eq.s32.totalorder %s17, 0
      %p37 = por %p35, %p36
      %p38 = scmp.ne.s32.totalorder %s27, %s30
      %p39 = scmp.eq.s32.totalorder %s22, 1
      %p40 = por %p38, %p39
      %p41 = scmp.ne.s32.totalorder %s30, %s31
      %p42 = scmp.eq.s32.totalorder %s22, 0
      %p43 = por %p41, %p42
      %p44 = scmp.ne.s32.totalorder %s30, %s31
      %p45 = scmp.eq.s32.totalorder %s23, 1
      %p46 = por %p44, %p45
      %p48 = scmp.ne.s32.totalorder %s31, %s47
      %p49 = scmp.eq.s32.totalorder %s23, 0
      %p50 = por %p48, %p49
      %s52 = sadd.s32 %s51, 1
      %p55 = scmp.eq.s32.totalorder %s17, 1
      %p56 = scmp.ne.s32.totalorder %s51, %s53
      %p57 = scmp.eq.s32.totalorder %s17, 0
      %p58 = por %p56, %p57
      %p59 = scmp.ne.s32.totalorder %s51, %s53
      %p60 = scmp.eq.s32.totalorder %s22, 1
      %p61 = por %p59, %p60
      %p62 = scmp.ne.s32.totalorder %s53, %s54
      %p63 = scmp.eq.s32.totalorder %s22, 0
      %p64 = por %p62, %p63
      %p65 = scmp.ne.s32.totalorder %s53, %s54
      %p66 = scmp.eq.s32.totalorder %s23, 1
      %p67 = por %p65, %p66
      %p69 = scmp.ne.s32.totalorder %s54, %s68
      %p70 = scmp.eq.s32.totalorder %s23, 0
      %p71 = por %p69, %p70
      %s73 = sadd.s32 %s72, 1
      %p76 = scmp.eq.s32.totalorder %s17, 1
      %p77 = scmp.ne.s32.totalorder %s72, %s74
      %p78 = scmp.eq.s32.totalorder %s17, 0
      %p79 = por %p77, %p78
      %p80 = scmp.ne.s32.totalorder %s72, %s74
      %p81 = scmp.eq.s32.totalorder %s22, 1
      %p82 = por %p80, %p81
      %p83 = scmp.ne.s32.totalorder %s74, %s75
      %p84 = scmp.eq.s32.totalorder %s22, 0
      %p85 = por %p83, %p84
      %p86 = scmp.ne.s32.totalorder %s74, %s75
      %p87 = scmp.eq.s32.totalorder %s23, 1
      %p88 = por %p86, %p87
      %p90 = scmp.ne.s32.totalorder %s75, %s89
      %p91 = scmp.eq.s32.totalorder %s23, 0
      %p92 = por %p90, %p91
      %s94 = sadd.s32 %s93, 1
      %p97 = scmp.eq.s32.totalorder %s17, 1
      %p98 = scmp.ne.s32.totalorder %s93, %s95
      %p99 = scmp.eq.s32.totalorder %s17, 0
      %p100 = por %p98, %p99
      %p101 = scmp.ne.s32.totalorder %s93, %s95
      %p102 = scmp.eq.s32.totalorder %s22, 1
      %p103 = por %p101, %p102
      %p104 = scmp.ne.s32.totalorder %s95, %s96
      %p105 = scmp.eq.s32.totalorder %s22, 0
      %p106 = por %p104, %p105
      %p107 = scmp.ne.s32.totalorder %s95, %s96
      %p108 = scmp.eq.s32.totalorder %s23, 1
      %p109 = por %p107, %p108
      %p111 = scmp.ne.s32.totalorder %s96, %s110
      %p112 = scmp.eq.s32.totalorder %s23, 0
      %p113 = por %p111, %p112
      %s115 = sadd.s32 %s114, 1
      %p118 = scmp.eq.s32.totalorder %s17, 1
      %p119 = scmp.ne.s32.totalorder %s114, %s116
      %p120 = scmp.eq.s32.totalorder %s17, 0
      %p121 = por %p119, %p120
      %p122 = scmp.ne.s32.totalorder %s114, %s116
      %p123 = scmp.eq.s32.totalorder %s22, 1
      %p124 = por %p122, %p123
      %p125 = scmp.ne.s32.totalorder %s116, %s117
      %p126 = scmp.eq.s32.totalorder %s22, 0
      %p127 = por %p125, %p126
      %p128 = scmp.ne.s32.totalorder %s116, %s117
      %p129 = scmp.eq.s32.totalorder %s23, 1
      %p130 = por %p128, %p129
      %p132 = scmp.ne.s32.totalorder %s117, %s131
      %p133 = scmp.eq.s32.totalorder %s23, 0
      %p134 = por %p132, %p133
      %s135 = ssub.s32 %s17, %s24
      %p136 = scmp.eq.s32.totalorder %s135, 0
      %s138 = sadd.s32 %s137, 1
      %s139 = scalar_select %p136, %s137, %s138
      %p142 = pneg %p136
      %p143 = scmp.eq.s32.totalorder %s17, 1
      %p144 = por %p142, %p143
      %p145 = scmp.ne.s32.totalorder %s137, %s140
      %p146 = scmp.eq.s32.totalorder %s17, 0
      %p147 = por %p145, %p146
      %p148 = scmp.ne.s32.totalorder %s137, %s140
      %p149 = scmp.eq.s32.totalorder %s22, 1
      %p150 = por %p148, %p149
      %p151 = scmp.ne.s32.totalorder %s140, %s141
      %p152 = scmp.eq.s32.totalorder %s22, 0
      %p153 = por %p151, %p152
      %p154 = scmp.ne.s32.totalorder %s140, %s141
      %p155 = scmp.eq.s32.totalorder %s23, 1
      %p156 = por %p154, %p155
      %p158 = scmp.ne.s32.totalorder %s141, %s157
      %p159 = scmp.eq.s32.totalorder %s23, 0
      %p160 = por %p158, %p159
      %p161 = scmp.le.s32.totalorder 1, %s17
      %p162 = scmp.lt.s32.totalorder %s17, 3
      %p163 = pnand %p161, %p162
      %p164 = pneg %p163
      // Predicated region
      $region9: #{tpu_custom_call.1} parent=5 // pred_check
        _
      $region10: #{tpu_custom_call.1} parent=5 // pred_check_branch
        %166 = sbr.rel (%p163) target = $region12
      $region11: #{tpu_custom_call.1} parent=5 // pred_region
        %s167 = ssub.s32 %s17, 1
        // Predicated region
        $region13: #{tpu_custom_call.1} parent=11 // pred_check
          %p168 = pneg %p64
        $region14: #{tpu_custom_call.1} parent=11 // pred_check_branch
          %170 = sbr.rel (%p168) target = $region16
        $region15: #{tpu_custom_call.1} parent=11 // pred_region
          _
        $region16: #{tpu_custom_call.1} parent=11 // pred_fallthru
          _
        // Predicated region
        $region17: #{tpu_custom_call.1} parent=11 // pred_check
          %p171 = pneg %p85
        $region18: #{tpu_custom_call.1} parent=11 // pred_check_branch
          %173 = sbr.rel (%p171) target = $region20
        $region19: #{tpu_custom_call.1} parent=11 // pred_region
          _
        $region20: #{tpu_custom_call.1} parent=11 // pred_fallthru
          _
        // Predicated region
        $region21: #{tpu_custom_call.1} parent=11 // pred_check
          %p174 = pneg %p106
        $region22: #{tpu_custom_call.1} parent=11 // pred_check_branch
          %176 = sbr.rel (%p174) target = $region24
        $region23: #{tpu_custom_call.1} parent=11 // pred_region
          _
        $region24: #{tpu_custom_call.1} parent=11 // pred_fallthru
          _
        // Predicated region
        $region25: #{tpu_custom_call.1} parent=11 // pred_check
          %p177 = pneg %p127
        $region26: #{tpu_custom_call.1} parent=11 // pred_check_branch
          %179 = sbr.rel (%p177) target = $region28
        $region27: #{tpu_custom_call.1} parent=11 // pred_region
          _
        $region28: #{tpu_custom_call.1} parent=11 // pred_fallthru
          _
      $region12: #{tpu_custom_call.1} parent=5 // pred_fallthru
        _
      %p180 = scmp.lt.s32.totalorder %s17, 2
      // Predicated region
      $region29: #{tpu_custom_call.1} parent=5 // pred_check
        %p181 = pneg %p180
      $region30: #{tpu_custom_call.1} parent=5 // pred_check_branch
        %183 = sbr.rel (%p181) target = $region32
      $region31: #{tpu_custom_call.1} parent=5 // pred_region
        // Predicated region
        $region33: #{tpu_custom_call.1} parent=31 // pred_check
          %p184 = pneg %p37
        $region34: #{tpu_custom_call.1} parent=31 // pred_check_branch
          %186 = sbr.rel (%p184) target = $region36
        $region35: #{tpu_custom_call.1} parent=31 // pred_region
          %s187 = sand.u32 %s27, 1
          %s188 = scalar_lea.sflag [#allocation3], %s187
          %s189 = sand.u32 %s27, 1
          %s190 = smul.addr %s189, 8
          %s191 = scalar_lea.vmem [#allocation2], %s190
          %s193 = ssub.s32 128, 128
          %194 = vsyncadd %s188, %s193
          %s195 = smul.addr %s17, 128
          %s196 = scalar_lea.hbm %s0, %s195
          %s198 = sshll.u32 %s191, 4
          %s199 = int_to_ptr.vmem [resolvable:$true] %s198
          %201 = dma.hbm_to_vmem [thread:$0]  %s196, 128, %s199, %s188
        $region36: #{tpu_custom_call.1} parent=31 // pred_fallthru
          _
      $region32: #{tpu_custom_call.1} parent=5 // pred_fallthru
        _
      %p202 = scmp.le.s32.totalorder 1, %s17
      %p203 = scmp.lt.s32.totalorder %s17, 3
      %p204 = pnand %p202, %p203
      %p205 = pneg %p204
      // Predicated region
      $region37: #{tpu_custom_call.1} parent=5 // pred_check
        _
      $region38: #{tpu_custom_call.1} parent=5 // pred_check_branch
        %207 = sbr.rel (%p204) target = $region40
      $region39: #{tpu_custom_call.1} parent=5 // pred_region
        %s208 = ssub.s32 %s17, 1
        %s209 = sand.u32 %s30, 1
        %s210 = scalar_lea.sflag [#allocation3], %s209
        %s211 = sand.u32 %s30, 1
        %s212 = smul.addr %s211, 8
        %s213 = scalar_lea.vmem [#allocation2], %s212
        // Predicated region
        $region41: #{tpu_custom_call.1} parent=39 // pred_check
          %p214 = pneg %p43
        $region42: #{tpu_custom_call.1} parent=39 // pred_check_branch
          %216 = sbr.rel (%p214) target = $region44
        $region43: #{tpu_custom_call.1} parent=39 // pred_region
          %217 = dma.done %s210, 128
        $region44: #{tpu_custom_call.1} parent=39 // pred_fallthru
          _
        %s218 = sand.u32 %s30, 1
        %s219 = scalar_lea.sflag [#allocation3], %s218
        %s220 = sand.u32 %s30, 1
        %s221 = smul.addr %s220, 8
        %s222 = scalar_lea.vmem [#allocation2], %s221
        %p223 = pneg %p43
        %p224 = pneg %p40
        %p225 = pneg %p64
        %p226 = pneg %p61
        %p227 = pneg %p85
        %p228 = pneg %p82
        %p229 = pneg %p106
        %p230 = pneg %p103
        %p231 = pneg %p127
        %p232 = pneg %p124
        %p233 = pneg %p153
        %p234 = pneg %p150
        %s235 = sand.u32 %s140, 1
        %s236 = scalar_lea.sflag [#allocation4], %s235
        %s237 = sand.u32 %s140, 1
        %s238 = smul.addr %s237, 8
        %s239 = scalar_lea.vmem [#allocation5], %s238
        %v241 = vlaneseq
        %v242 = vand.u32 %v241, 127
        %vm243 = vcmp.lt.s32.totalorder %v242, 0
        %v244 = vsub.s32 0, %v242
        %v245 = vsel %vm243, %v244, %v242
        %v246 = vshrl.u32 %v245, 7
        %v247 = vand.u32 %v245, 127
        %v248 = vsub.s32 0, %v247
        %v249 = vsel %vm243, %v248, %v247
        %vm250 = vcmp.ne.s32.totalorder %v249, 0
        %vm251 = vcmp.lt.s32.totalorder %v249, 0
        %vm252 = vmand %vm251, %vm250
        %v253 = vadd.s32 %v249, 128
        %v254 = vsel %vm252, %v253, %v249
        %vm255 = vcmp.ge.s32.totalorder %v254, 1
        %vm256 = vcmp.ge.s32.totalorder %v254, 2
        %vm257 = vcmp.ge.s32.totalorder %v254, 4
        %v258 = vld [vmem:[%s1] sm:$0xf]
        %v259 = vld [vmem:[%s1 + $0x4] sm:$0xf]
        %v260 = vld [vmem:[%s1 + $0x8] sm:$0xf]
        %v261 = vld [vmem:[%s1 + $0xc] sm:$0xf]
        %v262 = vld [vmem:[%s1 + $0x10] sm:$0xf]
        %v263 = vld [vmem:[%s1 + $0x14] sm:$0xf]
        %v264 = vld [vmem:[%s3] sm:$0xf]
        %v265 = vld [vmem:[%s3 + $0x4] sm:$0xf]
        %v266 = vld [vmem:[%s3 + $0x8] sm:$0xf]
        %v267 = vld [vmem:[%s3 + $0xc] sm:$0xf]
        %v268 = vld [vmem:[%s3 + $0x10] sm:$0xf]
        %v269 = vld [vmem:[%s3 + $0x14] sm:$0xf]
        %v270 = vld [vmem:[%s2] sm:$0xff]
        %v271 = vld [vmem:[%s2 + $0x8] sm:$0xff]
        %v272 = vld [vmem:[%s2 + $0x10] sm:$0xff]
        %v273 = vld [vmem:[%s4] sm:$0xff]
        %v274 = vld [vmem:[%s4 + $0x8] sm:$0xff]
        %v275 = vld [vmem:[%s4 + $0x10] sm:$0xff]
        %v276 = vld [vmem:[%s213] sm:$0xff]
        %277 = vrot.lane.b32.xlu0 %v276, 1
        %v278 = vpop.permute.xlu0 %277
        %v279 = vsel %vm255, 1, 0
        %vm280 = vcmp.eq.s32.totalorder %v279, 1
        %v281 = vsel %vm280, %v278, 0.0
        %v282 = vpack.c.bf16 %v281, %v281
        %v283 = vpack.c.bf16 %v276, %v276
        %vm284 = vcmask 64512
        %v286 = vsel %vm284, %v259, 0
        %vm288 = vcmask 1043456
        %v290 = vsel %vm288, %v283, 0
        %292 = vmatprep.subr.bf16.mxu0 0
        %293 = vmatpush1.bf16.msra.mxu0 %v290
        %294 = vmatprep.subr.bf16.mxu0 0
        %295 = vmatpush1.bf16.msra.mxu0 0
        %296 = vmatprep.subr.bf16.mxu0 0
        %297 = vmatpush1.bf16.msra.mxu0 0
        %298 = vmatprep.subr.bf16.mxu0 0
        %299 = vmatpush1.bf16.msra.mxu0 0
        %300 = vmatprep.subr.bf16.mxu0 0
        %301 = vmatpush1.bf16.msra.mxu0 0
        %302 = vmatprep.subr.bf16.mxu0 0
        %303 = vmatpush1.bf16.msra.mxu0 0
        %304 = vmatprep.subr.bf16.mxu0 0
        %305 = vmatpush1.bf16.msra.mxu0 0
        %306 = vmatprep.subr.bf16.mxu0 0
        %307 = vmatpush1.bf16.msra.mxu0 0
        %308 = vmatprep.subr.bf16.mxu0 0
        %309 = vmatpush1.bf16.msra.mxu0 0
        %310 = vmatprep.subr.bf16.mxu0 0
        %311 = vmatpush1.bf16.msra.mxu0 0
        %312 = vmatprep.subr.bf16.mxu0 0
        %313 = vmatpush1.bf16.msra.mxu0 0
        %314 = vmatprep.subr.bf16.mxu0 0
        %315 = vmatpush1.bf16.msra.mxu0 0
        %316 = vmatprep.subr.bf16.mxu0 0
        %317 = vmatpush1.bf16.msra.mxu0 0
        %318 = vmatprep.subr.bf16.mxu0 0
        %319 = vmatpush1.bf16.msra.mxu0 0
        %320 = vmatprep.subr.bf16.mxu0 0
        %321 = vmatpush1.bf16.msra.mxu0 0
        %322 = vmatprep.subr.bf16.mxu0 0
        %323 = vmatpush1.bf16.msra.mxu0 0
        %324 = vmatprep.mubr.bf16.mxu0 0
        %325 = vmatmul.mubr.bf16.gmra.mrb[0].mxu0 %v286
        %v326 = vpop.f32.mrb[0].mxu0
        %v327 = vadd.f32 0.0, %v326
        %v328 = vpop.f32.mrb[0].mxu0
        %v329 = vpop.f32.mrb[0].mxu0
        %v330 = vpop.f32.mrb[0].mxu0
        %331 = vdwg.mxu0
        %v333 = vsel %vm284, %v258, 0
        %v336 = vsel %vm288, %v282, 0
        %338 = vmatprep.subr.bf16.mxu0 0
        %339 = vmatpush1.bf16.msra.mxu0 %v336
        %340 = vmatprep.subr.bf16.mxu0 0
        %341 = vmatpush1.bf16.msra.mxu0 0
        %342 = vmatprep.subr.bf16.mxu0 0
        %343 = vmatpush1.bf16.msra.mxu0 0
        %344 = vmatprep.subr.bf16.mxu0 0
        %345 = vmatpush1.bf16.msra.mxu0 0
        %346 = vmatprep.subr.bf16.mxu0 0
        %347 = vmatpush1.bf16.msra.mxu0 0
        %348 = vmatprep.subr.bf16.mxu0 0
        %349 = vmatpush1.bf16.msra.mxu0 0
        %350 = vmatprep.subr.bf16.mxu0 0
        %351 = vmatpush1.bf16.msra.mxu0 0
        %352 = vmatprep.subr.bf16.mxu0 0
        %353 = vmatpush1.bf16.msra.mxu0 0
        %354 = vmatprep.subr.bf16.mxu0 0
        %355 = vmatpush1.bf16.msra.mxu0 0
        %356 = vmatprep.subr.bf16.mxu0 0
        %357 = vmatpush1.bf16.msra.mxu0 0
        %358 = vmatprep.subr.bf16.mxu0 0
        %359 = vmatpush1.bf16.msra.mxu0 0
        %360 = vmatprep.subr.bf16.mxu0 0
        %361 = vmatpush1.bf16.msra.mxu0 0
        %362 = vmatprep.subr.bf16.mxu0 0
        %363 = vmatpush1.bf16.msra.mxu0 0
        %364 = vmatprep.subr.bf16.mxu0 0
        %365 = vmatpush1.bf16.msra.mxu0 0
        %366 = vmatprep.subr.bf16.mxu0 0
        %367 = vmatpush1.bf16.msra.mxu0 0
        %368 = vmatprep.subr.bf16.mxu0 0
        %369 = vmatpush1.bf16.msra.mxu0 0
        %370 = vmatprep.mubr.bf16.mxu0 0
        %371 = vmatmul.mubr.bf16.gmra.mrb[0].mxu0 %v333
        %v372 = vpop.f32.mrb[0].mxu0
        %v373 = vadd.f32 %v327, %v372
        %v374 = vpop.f32.mrb[0].mxu0
        %v375 = vpop.f32.mrb[0].mxu0
        %v376 = vpop.f32.mrb[0].mxu0
        %377 = vdwg.mxu0
        %379 = vset.pattern.permute.xlu0 0
        %380 = vperm.xlu0 %379, %v270
        %v381 = vpop.permute.xlu0 %380
        %v383 = vadd.f32 %v373, %v381
        %v384 = vmax.f32 %v383, 0.0
        %385 = vrot.lane.b32.xlu0 %v384, 1
        %v386 = vpop.permute.xlu0 %385
        %v387 = vsel %vm280, %v386, 0.0
        %v388 = vpack.c.bf16 %v387, %v387
        %v389 = vpack.c.bf16 %v384, %v384
        %v391 = vsel %vm284, %v265, 0
        %v394 = vsel %vm288, %v389, 0
        %396 = vmatprep.subr.bf16.mxu0 0
        %397 = vmatpush1.bf16.msra.mxu0 %v394
        %398 = vmatprep.subr.bf16.mxu0 0
        %399 = vmatpush1.bf16.msra.mxu0 0
        %400 = vmatprep.subr.bf16.mxu0 0
        %401 = vmatpush1.bf16.msra.mxu0 0
        %402 = vmatprep.subr.bf16.mxu0 0
        %403 = vmatpush1.bf16.msra.mxu0 0
        %404 = vmatprep.subr.bf16.mxu0 0
        %405 = vmatpush1.bf16.msra.mxu0 0
        %406 = vmatprep.subr.bf16.mxu0 0
        %407 = vmatpush1.bf16.msra.mxu0 0
        %408 = vmatprep.subr.bf16.mxu0 0
        %409 = vmatpush1.bf16.msra.mxu0 0
        %410 = vmatprep.subr.bf16.mxu0 0
        %411 = vmatpush1.bf16.msra.mxu0 0
        %412 = vmatprep.subr.bf16.mxu0 0
        %413 = vmatpush1.bf16.msra.mxu0 0
        %414 = vmatprep.subr.bf16.mxu0 0
        %415 = vmatpush1.bf16.msra.mxu0 0
        %416 = vmatprep.subr.bf16.mxu0 0
        %417 = vmatpush1.bf16.msra.mxu0 0
        %418 = vmatprep.subr.bf16.mxu0 0
        %419 = vmatpush1.bf16.msra.mxu0 0
        %420 = vmatprep.subr.bf16.mxu0 0
        %421 = vmatpush1.bf16.msra.mxu0 0
        %422 = vmatprep.subr.bf16.mxu0 0
        %423 = vmatpush1.bf16.msra.mxu0 0
        %424 = vmatprep.subr.bf16.mxu0 0
        %425 = vmatpush1.bf16.msra.mxu0 0
        %426 = vmatprep.subr.bf16.mxu0 0
        %427 = vmatpush1.bf16.msra.mxu0 0
        %428 = vmatprep.mubr.bf16.mxu0 0
        %429 = vmatmul.mubr.bf16.gmra.mrb[0].mxu0 %v391
        %v430 = vpop.f32.mrb[0].mxu0
        %v431 = vadd.f32 0.0, %v430
        %v432 = vpop.f32.mrb[0].mxu0
        %v433 = vpop.f32.mrb[0].mxu0
        %v434 = vpop.f32.mrb[0].mxu0
        %435 = vdwg.mxu0
        %v437 = vsel %vm284, %v264, 0
        %v440 = vsel %vm288, %v388, 0
        %442 = vmatprep.subr.bf16.mxu0 0
        %443 = vmatpush1.bf16.msra.mxu0 %v440
        %444 = vmatprep.subr.bf16.mxu0 0
        %445 = vmatpush1.bf16.msra.mxu0 0
        %446 = vmatprep.subr.bf16.mxu0 0
        %447 = vmatpush1.bf16.msra.mxu0 0
        %448 = vmatprep.subr.bf16.mxu0 0
        %449 = vmatpush1.bf16.msra.mxu0 0
        %450 = vmatprep.subr.bf16.mxu0 0
        %451 = vmatpush1.bf16.msra.mxu0 0
        %452 = vmatprep.subr.bf16.mxu0 0
        %453 = vmatpush1.bf16.msra.mxu0 0
        %454 = vmatprep.subr.bf16.mxu0 0
        %455 = vmatpush1.bf16.msra.mxu0 0
        %456 = vmatprep.subr.bf16.mxu0 0
        %457 = vmatpush1.bf16.msra.mxu0 0
        %458 = vmatprep.subr.bf16.mxu0 0
        %459 = vmatpush1.bf16.msra.mxu0 0
        %460 = vmatprep.subr.bf16.mxu0 0
        %461 = vmatpush1.bf16.msra.mxu0 0
        %462 = vmatprep.subr.bf16.mxu0 0
        %463 = vmatpush1.bf16.msra.mxu0 0
        %464 = vmatprep.subr.bf16.mxu0 0
        %465 = vmatpush1.bf16.msra.mxu0 0
        %466 = vmatprep.subr.bf16.mxu0 0
        %467 = vmatpush1.bf16.msra.mxu0 0
        %468 = vmatprep.subr.bf16.mxu0 0
        %469 = vmatpush1.bf16.msra.mxu0 0
        %470 = vmatprep.subr.bf16.mxu0 0
        %471 = vmatpush1.bf16.msra.mxu0 0
        %472 = vmatprep.subr.bf16.mxu0 0
        %473 = vmatpush1.bf16.msra.mxu0 0
        %474 = vmatprep.mubr.bf16.mxu0 0
        %475 = vmatmul.mubr.bf16.gmra.mrb[0].mxu0 %v437
        %v476 = vpop.f32.mrb[0].mxu0
        %v477 = vadd.f32 %v431, %v476
        %v478 = vpop.f32.mrb[0].mxu0
        %v479 = vpop.f32.mrb[0].mxu0
        %v480 = vpop.f32.mrb[0].mxu0
        %481 = vdwg.mxu0
        %483 = vset.pattern.permute.xlu0 0
        %484 = vperm.xlu0 %483, %v273
        %v485 = vpop.permute.xlu0 %484
        %v487 = vadd.f32 %v477, %v485
        %v488 = vmax.f32 %v487, 0.0
        %v489 = vadd.f32 %v488, %v276
        %v490 = vmax.f32 %v489, 0.0
        %491 = vrot.lane.b32.xlu0 %v490, 2
        %v492 = vpop.permute.xlu0 %491
        %v493 = vsel %vm256, 1, 0
        %vm494 = vcmp.eq.s32.totalorder %v493, 1
        %v495 = vsel %vm494, %v492, 0.0
        %v496 = vpack.c.bf16 %v495, %v495
        %v497 = vpack.c.bf16 %v490, %v490
        %v499 = vsel %vm284, %v261, 0
        %v502 = vsel %vm288, %v497, 0
        %504 = vmatprep.subr.bf16.mxu0 0
        %505 = vmatpush1.bf16.msra.mxu0 %v502
        %506 = vmatprep.subr.bf16.mxu0 0
        %507 = vmatpush1.bf16.msra.mxu0 0
        %508 = vmatprep.subr.bf16.mxu0 0
        %509 = vmatpush1.bf16.msra.mxu0 0
        %510 = vmatprep.subr.bf16.mxu0 0
        %511 = vmatpush1.bf16.msra.mxu0 0
        %512 = vmatprep.subr.bf16.mxu0 0
        %513 = vmatpush1.bf16.msra.mxu0 0
        %514 = vmatprep.subr.bf16.mxu0 0
        %515 = vmatpush1.bf16.msra.mxu0 0
        %516 = vmatprep.subr.bf16.mxu0 0
        %517 = vmatpush1.bf16.msra.mxu0 0
        %518 = vmatprep.subr.bf16.mxu0 0
        %519 = vmatpush1.bf16.msra.mxu0 0
        %520 = vmatprep.subr.bf16.mxu0 0
        %521 = vmatpush1.bf16.msra.mxu0 0
        %522 = vmatprep.subr.bf16.mxu0 0
        %523 = vmatpush1.bf16.msra.mxu0 0
        %524 = vmatprep.subr.bf16.mxu0 0
        %525 = vmatpush1.bf16.msra.mxu0 0
        %526 = vmatprep.subr.bf16.mxu0 0
        %527 = vmatpush1.bf16.msra.mxu0 0
        %528 = vmatprep.subr.bf16.mxu0 0
        %529 = vmatpush1.bf16.msra.mxu0 0
        %530 = vmatprep.subr.bf16.mxu0 0
        %531 = vmatpush1.bf16.msra.mxu0 0
        %532 = vmatprep.subr.bf16.mxu0 0
        %533 = vmatpush1.bf16.msra.mxu0 0
        %534 = vmatprep.subr.bf16.mxu0 0
        %535 = vmatpush1.bf16.msra.mxu0 0
        %536 = vmatprep.mubr.bf16.mxu0 0
        %537 = vmatmul.mubr.bf16.gmra.mrb[0].mxu0 %v499
        %v538 = vpop.f32.mrb[0].mxu0
        %v539 = vadd.f32 0.0, %v538
        %v540 = vpop.f32.mrb[0].mxu0
        %v541 = vpop.f32.mrb[0].mxu0
        %v542 = vpop.f32.mrb[0].mxu0
        %543 = vdwg.mxu0
        %v545 = vsel %vm284, %v260, 0
        %v548 = vsel %vm288, %v496, 0
        %550 = vmatprep.subr.bf16.mxu0 0
        %551 = vmatpush1.bf16.msra.mxu0 %v548
        %552 = vmatprep.subr.bf16.mxu0 0
        %553 = vmatpush1.bf16.msra.mxu0 0
        %554 = vmatprep.subr.bf16.mxu0 0
        %555 = vmatpush1.bf16.msra.mxu0 0
        %556 = vmatprep.subr.bf16.mxu0 0
        %557 = vmatpush1.bf16.msra.mxu0 0
        %558 = vmatprep.subr.bf16.mxu0 0
        %559 = vmatpush1.bf16.msra.mxu0 0
        %560 = vmatprep.subr.bf16.mxu0 0
        %561 = vmatpush1.bf16.msra.mxu0 0
        %562 = vmatprep.subr.bf16.mxu0 0
        %563 = vmatpush1.bf16.msra.mxu0 0
        %564 = vmatprep.subr.bf16.mxu0 0
        %565 = vmatpush1.bf16.msra.mxu0 0
        %566 = vmatprep.subr.bf16.mxu0 0
        %567 = vmatpush1.bf16.msra.mxu0 0
        %568 = vmatprep.subr.bf16.mxu0 0
        %569 = vmatpush1.bf16.msra.mxu0 0
        %570 = vmatprep.subr.bf16.mxu0 0
        %571 = vmatpush1.bf16.msra.mxu0 0
        %572 = vmatprep.subr.bf16.mxu0 0
        %573 = vmatpush1.bf16.msra.mxu0 0
        %574 = vmatprep.subr.bf16.mxu0 0
        %575 = vmatpush1.bf16.msra.mxu0 0
        %576 = vmatprep.subr.bf16.mxu0 0
        %577 = vmatpush1.bf16.msra.mxu0 0
        %578 = vmatprep.subr.bf16.mxu0 0
        %579 = vmatpush1.bf16.msra.mxu0 0
        %580 = vmatprep.subr.bf16.mxu0 0
        %581 = vmatpush1.bf16.msra.mxu0 0
        %582 = vmatprep.mubr.bf16.mxu0 0
        %583 = vmatmul.mubr.bf16.gmra.mrb[0].mxu0 %v545
        %v584 = vpop.f32.mrb[0].mxu0
        %v585 = vadd.f32 %v539, %v584
        %v586 = vpop.f32.mrb[0].mxu0
        %v587 = vpop.f32.mrb[0].mxu0
        %v588 = vpop.f32.mrb[0].mxu0
        %589 = vdwg.mxu0
        %591 = vset.pattern.permute.xlu0 0
        %592 = vperm.xlu0 %591, %v271
        %v593 = vpop.permute.xlu0 %592
        %v595 = vadd.f32 %v585, %v593
        %v596 = vmax.f32 %v595, 0.0
        %597 = vrot.lane.b32.xlu0 %v596, 2
        %v598 = vpop.permute.xlu0 %597
        %v599 = vsel %vm494, %v598, 0.0
        %v600 = vpack.c.bf16 %v599, %v599
        %v601 = vpack.c.bf16 %v596, %v596
        %v603 = vsel %vm284, %v267, 0
        %v606 = vsel %vm288, %v601, 0
        %608 = vmatprep.subr.bf16.mxu0 0
        %609 = vmatpush1.bf16.msra.mxu0 %v606
        %610 = vmatprep.subr.bf16.mxu0 0
        %611 = vmatpush1.bf16.msra.mxu0 0
        %612 = vmatprep.subr.bf16.mxu0 0
        %613 = vmatpush1.bf16.msra.mxu0 0
        %614 = vmatprep.subr.bf16.mxu0 0
        %615 = vmatpush1.bf16.msra.mxu0 0
        %616 = vmatprep.subr.bf16.mxu0 0
        %617 = vmatpush1.bf16.msra.mxu0 0
        %618 = vmatprep.subr.bf16.mxu0 0
        %619 = vmatpush1.bf16.msra.mxu0 0
        %620 = vmatprep.subr.bf16.mxu0 0
        %621 = vmatpush1.bf16.msra.mxu0 0
        %622 = vmatprep.subr.bf16.mxu0 0
        %623 = vmatpush1.bf16.msra.mxu0 0
        %624 = vmatprep.subr.bf16.mxu0 0
        %625 = vmatpush1.bf16.msra.mxu0 0
        %626 = vmatprep.subr.bf16.mxu0 0
        %627 = vmatpush1.bf16.msra.mxu0 0
        %628 = vmatprep.subr.bf16.mxu0 0
        %629 = vmatpush1.bf16.msra.mxu0 0
        %630 = vmatprep.subr.bf16.mxu0 0
        %631 = vmatpush1.bf16.msra.mxu0 0
        %632 = vmatprep.subr.bf16.mxu0 0
        %633 = vmatpush1.bf16.msra.mxu0 0
        %634 = vmatprep.subr.bf16.mxu0 0
        %635 = vmatpush1.bf16.msra.mxu0 0
        %636 = vmatprep.subr.bf16.mxu0 0
        %637 = vmatpush1.bf16.msra.mxu0 0
        %638 = vmatprep.subr.bf16.mxu0 0
        %639 = vmatpush1.bf16.msra.mxu0 0
        %640 = vmatprep.mubr.bf16.mxu0 0
        %641 = vmatmul.mubr.bf16.gmra.mrb[0].mxu0 %v603
        %v642 = vpop.f32.mrb[0].mxu0
        %v643 = vadd.f32 0.0, %v642
        %v644 = vpop.f32.mrb[0].mxu0
        %v645 = vpop.f32.mrb[0].mxu0
        %v646 = vpop.f32.mrb[0].mxu0
        %647 = vdwg.mxu0
        %v649 = vsel %vm284, %v266, 0
        %v652 = vsel %vm288, %v600, 0
        %654 = vmatprep.subr.bf16.mxu0 0
        %655 = vmatpush1.bf16.msra.mxu0 %v652
        %656 = vmatprep.subr.bf16.mxu0 0
        %657 = vmatpush1.bf16.msra.mxu0 0
        %658 = vmatprep.subr.bf16.mxu0 0
        %659 = vmatpush1.bf16.msra.mxu0 0
        %660 = vmatprep.subr.bf16.mxu0 0
        %661 = vmatpush1.bf16.msra.mxu0 0
        %662 = vmatprep.subr.bf16.mxu0 0
        %663 = vmatpush1.bf16.msra.mxu0 0
        %664 = vmatprep.subr.bf16.mxu0 0
        %665 = vmatpush1.bf16.msra.mxu0 0
        %666 = vmatprep.subr.bf16.mxu0 0
        %667 = vmatpush1.bf16.msra.mxu0 0
        %668 = vmatprep.subr.bf16.mxu0 0
        %669 = vmatpush1.bf16.msra.mxu0 0
        %670 = vmatprep.subr.bf16.mxu0 0
        %671 = vmatpush1.bf16.msra.mxu0 0
        %672 = vmatprep.subr.bf16.mxu0 0
        %673 = vmatpush1.bf16.msra.mxu0 0
        %674 = vmatprep.subr.bf16.mxu0 0
        %675 = vmatpush1.bf16.msra.mxu0 0
        %676 = vmatprep.subr.bf16.mxu0 0
        %677 = vmatpush1.bf16.msra.mxu0 0
        %678 = vmatprep.subr.bf16.mxu0 0
        %679 = vmatpush1.bf16.msra.mxu0 0
        %680 = vmatprep.subr.bf16.mxu0 0
        %681 = vmatpush1.bf16.msra.mxu0 0
        %682 = vmatprep.subr.bf16.mxu0 0
        %683 = vmatpush1.bf16.msra.mxu0 0
        %684 = vmatprep.subr.bf16.mxu0 0
        %685 = vmatpush1.bf16.msra.mxu0 0
        %686 = vmatprep.mubr.bf16.mxu0 0
        %687 = vmatmul.mubr.bf16.gmra.mrb[0].mxu0 %v649
        %v688 = vpop.f32.mrb[0].mxu0
        %v689 = vadd.f32 %v643, %v688
        %v690 = vpop.f32.mrb[0].mxu0
        %v691 = vpop.f32.mrb[0].mxu0
        %v692 = vpop.f32.mrb[0].mxu0
        %693 = vdwg.mxu0
        %695 = vset.pattern.permute.xlu0 0
        %696 = vperm.xlu0 %695, %v274
        %v697 = vpop.permute.xlu0 %696
        %v699 = vadd.f32 %v689, %v697
        %v700 = vmax.f32 %v699, 0.0
        %v701 = vadd.f32 %v700, %v490
        %v702 = vmax.f32 %v701, 0.0
        %703 = vrot.lane.b32.xlu0 %v702, 4
        %v704 = vpop.permute.xlu0 %703
        %v705 = vsel %vm257, 1, 0
        %vm706 = vcmp.eq.s32.totalorder %v705, 1
        %v707 = vsel %vm706, %v704, 0.0
        %v708 = vpack.c.bf16 %v707, %v707
        %v709 = vpack.c.bf16 %v702, %v702
        %v711 = vsel %vm284, %v263, 0
        %v714 = vsel %vm288, %v709, 0
        %716 = vmatprep.subr.bf16.mxu0 0
        %717 = vmatpush1.bf16.msra.mxu0 %v714
        %718 = vmatprep.subr.bf16.mxu0 0
        %719 = vmatpush1.bf16.msra.mxu0 0
        %720 = vmatprep.subr.bf16.mxu0 0
        %721 = vmatpush1.bf16.msra.mxu0 0
        %722 = vmatprep.subr.bf16.mxu0 0
        %723 = vmatpush1.bf16.msra.mxu0 0
        %724 = vmatprep.subr.bf16.mxu0 0
        %725 = vmatpush1.bf16.msra.mxu0 0
        %726 = vmatprep.subr.bf16.mxu0 0
        %727 = vmatpush1.bf16.msra.mxu0 0
        %728 = vmatprep.subr.bf16.mxu0 0
        %729 = vmatpush1.bf16.msra.mxu0 0
        %730 = vmatprep.subr.bf16.mxu0 0
        %731 = vmatpush1.bf16.msra.mxu0 0
        %732 = vmatprep.subr.bf16.mxu0 0
        %733 = vmatpush1.bf16.msra.mxu0 0
        %734 = vmatprep.subr.bf16.mxu0 0
        %735 = vmatpush1.bf16.msra.mxu0 0
        %736 = vmatprep.subr.bf16.mxu0 0
        %737 = vmatpush1.bf16.msra.mxu0 0
        %738 = vmatprep.subr.bf16.mxu0 0
        %739 = vmatpush1.bf16.msra.mxu0 0
        %740 = vmatprep.subr.bf16.mxu0 0
        %741 = vmatpush1.bf16.msra.mxu0 0
        %742 = vmatprep.subr.bf16.mxu0 0
        %743 = vmatpush1.bf16.msra.mxu0 0
        %744 = vmatprep.subr.bf16.mxu0 0
        %745 = vmatpush1.bf16.msra.mxu0 0
        %746 = vmatprep.subr.bf16.mxu0 0
        %747 = vmatpush1.bf16.msra.mxu0 0
        %748 = vmatprep.mubr.bf16.mxu0 0
        %749 = vmatmul.mubr.bf16.gmra.mrb[0].mxu0 %v711
        %v750 = vpop.f32.mrb[0].mxu0
        %v751 = vadd.f32 0.0, %v750
        %v752 = vpop.f32.mrb[0].mxu0
        %v753 = vpop.f32.mrb[0].mxu0
        %v754 = vpop.f32.mrb[0].mxu0
        %755 = vdwg.mxu0
        %v757 = vsel %vm284, %v262, 0
        %v760 = vsel %vm288, %v708, 0
        %762 = vmatprep.subr.bf16.mxu0 0
        %763 = vmatpush1.bf16.msra.mxu0 %v760
        %764 = vmatprep.subr.bf16.mxu0 0
        %765 = vmatpush1.bf16.msra.mxu0 0
        %766 = vmatprep.subr.bf16.mxu0 0
        %767 = vmatpush1.bf16.msra.mxu0 0
        %768 = vmatprep.subr.bf16.mxu0 0
        %769 = vmatpush1.bf16.msra.mxu0 0
        %770 = vmatprep.subr.bf16.mxu0 0
        %771 = vmatpush1.bf16.msra.mxu0 0
        %772 = vmatprep.subr.bf16.mxu0 0
        %773 = vmatpush1.bf16.msra.mxu0 0
        %774 = vmatprep.subr.bf16.mxu0 0
        %775 = vmatpush1.bf16.msra.mxu0 0
        %776 = vmatprep.subr.bf16.mxu0 0
        %777 = vmatpush1.bf16.msra.mxu0 0
        %778 = vmatprep.subr.bf16.mxu0 0
        %779 = vmatpush1.bf16.msra.mxu0 0
        %780 = vmatprep.subr.bf16.mxu0 0
        %781 = vmatpush1.bf16.msra.mxu0 0
        %782 = vmatprep.subr.bf16.mxu0 0
        %783 = vmatpush1.bf16.msra.mxu0 0
        %784 = vmatprep.subr.bf16.mxu0 0
        %785 = vmatpush1.bf16.msra.mxu0 0
        %786 = vmatprep.subr.bf16.mxu0 0
        %787 = vmatpush1.bf16.msra.mxu0 0
        %788 = vmatprep.subr.bf16.mxu0 0
        %789 = vmatpush1.bf16.msra.mxu0 0
        %790 = vmatprep.subr.bf16.mxu0 0
        %791 = vmatpush1.bf16.msra.mxu0 0
        %792 = vmatprep.subr.bf16.mxu0 0
        %793 = vmatpush1.bf16.msra.mxu0 0
        %794 = vmatprep.mubr.bf16.mxu0 0
        %795 = vmatmul.mubr.bf16.gmra.mrb[0].mxu0 %v757
        %v796 = vpop.f32.mrb[0].mxu0
        %v797 = vadd.f32 %v751, %v796
        %v798 = vpop.f32.mrb[0].mxu0
        %v799 = vpop.f32.mrb[0].mxu0
        %v800 = vpop.f32.mrb[0].mxu0
        %801 = vdwg.mxu0
        %803 = vset.pattern.permute.xlu0 0
        %804 = vperm.xlu0 %803, %v272
        %v805 = vpop.permute.xlu0 %804
        %v807 = vadd.f32 %v797, %v805
        %v808 = vmax.f32 %v807, 0.0
        %809 = vrot.lane.b32.xlu0 %v808, 4
        %v810 = vpop.permute.xlu0 %809
        %v811 = vsel %vm706, %v810, 0.0
        %v812 = vpack.c.bf16 %v811, %v811
        %v813 = vpack.c.bf16 %v808, %v808
        %v815 = vsel %vm284, %v269, 0
        %v818 = vsel %vm288, %v813, 0
        %820 = vmatprep.subr.bf16.mxu0 0
        %821 = vmatpush1.bf16.msra.mxu0 %v818
        %822 = vmatprep.subr.bf16.mxu0 0
        %823 = vmatpush1.bf16.msra.mxu0 0
        %824 = vmatprep.subr.bf16.mxu0 0
        %825 = vmatpush1.bf16.msra.mxu0 0
        %826 = vmatprep.subr.bf16.mxu0 0
        %827 = vmatpush1.bf16.msra.mxu0 0
        %828 = vmatprep.subr.bf16.mxu0 0
        %829 = vmatpush1.bf16.msra.mxu0 0
        %830 = vmatprep.subr.bf16.mxu0 0
        %831 = vmatpush1.bf16.msra.mxu0 0
        %832 = vmatprep.subr.bf16.mxu0 0
        %833 = vmatpush1.bf16.msra.mxu0 0
        %834 = vmatprep.subr.bf16.mxu0 0
        %835 = vmatpush1.bf16.msra.mxu0 0
        %836 = vmatprep.subr.bf16.mxu0 0
        %837 = vmatpush1.bf16.msra.mxu0 0
        %838 = vmatprep.subr.bf16.mxu0 0
        %839 = vmatpush1.bf16.msra.mxu0 0
        %840 = vmatprep.subr.bf16.mxu0 0
        %841 = vmatpush1.bf16.msra.mxu0 0
        %842 = vmatprep.subr.bf16.mxu0 0
        %843 = vmatpush1.bf16.msra.mxu0 0
        %844 = vmatprep.subr.bf16.mxu0 0
        %845 = vmatpush1.bf16.msra.mxu0 0
        %846 = vmatprep.subr.bf16.mxu0 0
        %847 = vmatpush1.bf16.msra.mxu0 0
        %848 = vmatprep.subr.bf16.mxu0 0
        %849 = vmatpush1.bf16.msra.mxu0 0
        %850 = vmatprep.subr.bf16.mxu0 0
        %851 = vmatpush1.bf16.msra.mxu0 0
        %852 = vmatprep.mubr.bf16.mxu0 0
        %853 = vmatmul.mubr.bf16.gmra.mrb[0].mxu0 %v815
        %v854 = vpop.f32.mrb[0].mxu0
        %v855 = vadd.f32 0.0, %v854
        %v856 = vpop.f32.mrb[0].mxu0
        %v857 = vpop.f32.mrb[0].mxu0
        %v858 = vpop.f32.mrb[0].mxu0
        %859 = vdwg.mxu0
        %v861 = vsel %vm284, %v268, 0
        %v864 = vsel %vm288, %v812, 0
        %866 = vmatprep.subr.bf16.mxu0 0
        %867 = vmatpush1.bf16.msra.mxu0 %v864
        %868 = vmatprep.subr.bf16.mxu0 0
        %869 = vmatpush1.bf16.msra.mxu0 0
        %870 = vmatprep.subr.bf16.mxu0 0
        %871 = vmatpush1.bf16.msra.mxu0 0
        %872 = vmatprep.subr.bf16.mxu0 0
        %873 = vmatpush1.bf16.msra.mxu0 0
        %874 = vmatprep.subr.bf16.mxu0 0
        %875 = vmatpush1.bf16.msra.mxu0 0
        %876 = vmatprep.subr.bf16.mxu0 0
        %877 = vmatpush1.bf16.msra.mxu0 0
        %878 = vmatprep.subr.bf16.mxu0 0
        %879 = vmatpush1.bf16.msra.mxu0 0
        %880 = vmatprep.subr.bf16.mxu0 0
        %881 = vmatpush1.bf16.msra.mxu0 0
        %882 = vmatprep.subr.bf16.mxu0 0
        %883 = vmatpush1.bf16.msra.mxu0 0
        %884 = vmatprep.subr.bf16.mxu0 0
        %885 = vmatpush1.bf16.msra.mxu0 0
        %886 = vmatprep.subr.bf16.mxu0 0
        %887 = vmatpush1.bf16.msra.mxu0 0
        %888 = vmatprep.subr.bf16.mxu0 0
        %889 = vmatpush1.bf16.msra.mxu0 0
        %890 = vmatprep.subr.bf16.mxu0 0
        %891 = vmatpush1.bf16.msra.mxu0 0
        %892 = vmatprep.subr.bf16.mxu0 0
        %893 = vmatpush1.bf16.msra.mxu0 0
        %894 = vmatprep.subr.bf16.mxu0 0
        %895 = vmatpush1.bf16.msra.mxu0 0
        %896 = vmatprep.subr.bf16.mxu0 0
        %897 = vmatpush1.bf16.msra.mxu0 0
        %898 = vmatprep.mubr.bf16.mxu0 0
        %899 = vmatmul.mubr.bf16.gmra.mrb[0].mxu0 %v861
        %v900 = vpop.f32.mrb[0].mxu0
        %v901 = vadd.f32 %v855, %v900
        %v902 = vpop.f32.mrb[0].mxu0
        %v903 = vpop.f32.mrb[0].mxu0
        %v904 = vpop.f32.mrb[0].mxu0
        %905 = vdwg.mxu0
        %907 = vset.pattern.permute.xlu0 0
        %908 = vperm.xlu0 %907, %v275
        %v909 = vpop.permute.xlu0 %908
        %v911 = vadd.f32 %v901, %v909
        %v912 = vmax.f32 %v911, 0.0
        %v913 = vadd.f32 %v912, %v702
        %v914 = vmax.f32 %v913, 0.0
        %915 = vst [vmem:[%s239] sm:$0xff] %v914
        %s916 = sand.u32 %s140, 1
        %s917 = scalar_lea.sflag [#allocation4], %s916
        %s918 = sand.u32 %s140, 1
        %s919 = smul.addr %s918, 8
        %s920 = scalar_lea.vmem [#allocation5], %s919
        // Predicated region
        $region45: #{tpu_custom_call.1} parent=39 // pred_check
          %p921 = pneg %p150
        $region46: #{tpu_custom_call.1} parent=39 // pred_check_branch
          %923 = sbr.rel (%p921) target = $region48
        $region47: #{tpu_custom_call.1} parent=39 // pred_region
          %s925 = ssub.s32 128, 128
          %926 = vsyncadd %s917, %s925
          %s927 = smul.addr %s22, 128
          %s928 = scalar_lea.hbm %s5, %s927
          %s930 = sshll.u32 %s920, 4
          %s931 = int_to_ptr.vmem [resolvable:$true] %s930
          %933 = dma.vmem_to_hbm [thread:$0]  %s931, 128, %s928, %s917
        $region48: #{tpu_custom_call.1} parent=39 // pred_fallthru
          _
      $region40: #{tpu_custom_call.1} parent=5 // pred_fallthru
        _
      %p934 = scmp.le.s32.totalorder 2, %s17
      // Predicated region
      $region49: #{tpu_custom_call.1} parent=5 // pred_check
        %p935 = pneg %p934
      $region50: #{tpu_custom_call.1} parent=5 // pred_check_branch
        %937 = sbr.rel (%p935) target = $region52
      $region51: #{tpu_custom_call.1} parent=5 // pred_region
        %s938 = ssub.s32 %s17, 2
        // Predicated region
        $region53: #{tpu_custom_call.1} parent=51 // pred_check
          %p939 = pneg %p156
        $region54: #{tpu_custom_call.1} parent=51 // pred_check_branch
          %941 = sbr.rel (%p939) target = $region56
        $region55: #{tpu_custom_call.1} parent=51 // pred_region
          %s942 = sand.u32 %s141, 1
          %s943 = scalar_lea.sflag [#allocation4], %s942
          %s944 = sand.u32 %s141, 1
          %s945 = smul.addr %s944, 8
          %s946 = scalar_lea.vmem [#allocation5], %s945
          %947 = dma.done %s943, 128
        $region56: #{tpu_custom_call.1} parent=51 // pred_fallthru
          _
      $region52: #{tpu_custom_call.1} parent=5 // pred_fallthru
        _
    $region6: #{tpu_custom_call.1} parent=1 // loop_footer
      %s21 = sadd.s32 1, %s17
    $region7: #{tpu_custom_call.1} parent=1 // loop_footer_branch
      %16 = sbr.rel target = $region3
    $region8: #{tpu_custom_call.1} parent=1 // loop_exit
      _
    %948 = vsyncpa [#allocation3], 1
    %s949 = scalar_lea.sflag [#allocation3], 1
    %950 = vsyncpa %s949, 1
    %951 = vsyncpa [#allocation4], 1
    %s952 = scalar_lea.sflag [#allocation4], 1
    %953 = vsyncpa %s952, 1

</llo_original>
